<compile_context>
chip_gen: v7x
topology: tpu7x:2x2x1
jax: 0.10.0
libtpu: 0.0.40
codegen_flags: <defaults>
</compile_context>

<pallas_src>
import functools
import math

import jax
import jax.numpy as jnp
from jax.experimental import pallas as pl
from jax.experimental.pallas import tpu as pltpu


# ----------------------------- hparams (synthetic) ---------------------------
ENCODER_EMBEDDING_DIM = 32     # hparams.encoder_embedding_dim
TP_GST_USE_BERT = False        # hparams.tp_gst_use_bert
BERT_ENCODER_DIM = 0
TPSE_LINEAR_FC_LAYERS = 3      # hparams.tpse_linear_fc_layers  (>= 2 branch)
TPSE_LINEAR_FC_LAYER_DIM = 32  # hparams.tpse_linear_fc_layer_dim
TOKEN_EMBEDDING_SIZE = 16      # hparams.token_embedding_size

EMBED_DIM = ENCODER_EMBEDDING_DIM + (BERT_ENCODER_DIM if TP_GST_USE_BERT else 0)
HIDDEN_DIM = TPSE_LINEAR_FC_LAYER_DIM
TOKEN_DIM = TOKEN_EMBEDDING_SIZE
TOKEN_DIM_PADDED = 128         # lane-dense output (multiple of 128)

BATCH = 2
SEQ = 8

DEFAULT_BLOCK_ROWS = 1024      # large row block; same on v5e/v6e/v7x


# --------------------------------- kernel ------------------------------------
def tpse_mlp_kernel(x_ref, w1_ref, b1_ref, w2_ref, b2_ref, w3_ref, b3_ref,
                    o_ref):
    """One row-block of the MLP: 3 bf16 MXU matmuls (f32 acc) + f32 epilogue."""
    x = x_ref[...]                                               # (rb, E) f32
    h = jnp.dot(x.astype(jnp.bfloat16), w1_ref[...],
                preferred_element_type=jnp.float32)              # (rb, H) f32
    h = jnp.maximum(h + b1_ref[...], 0.0)                        # ReLU (f32)
    h = jnp.dot(h.astype(jnp.bfloat16), w2_ref[...],
                preferred_element_type=jnp.float32)              # (rb, H) f32
    h = jnp.maximum(h + b2_ref[...], 0.0)                        # ReLU (f32)
    h = jnp.dot(h.astype(jnp.bfloat16), w3_ref[...],
                preferred_element_type=jnp.float32)              # (rb, 128) f32
    o_ref[...] = jnp.tanh(h + b3_ref[...])                       # Tanh, lane-dense store


@functools.partial(jax.jit, static_argnames=("block_rows",))
def tpse_linear_forward(inputs, params, *, block_rows=DEFAULT_BLOCK_ROWS):
    """inputs: (B, S, E) float32 -> (B, S, token_dim) float32."""
    b, s, e = inputs.shape
    n = b * s
    x2d = inputs.reshape(n, e)

    w1, b1, w2, b2, w3, b3 = params
    t_pad = w3.shape[1]  # 128 (already padded lane-dense)

    # Row block: big block when there is enough work, otherwise the smallest
    # (8-sublane aligned) block covering all rows.  Tail rows are zero-padded
    # rather than shrinking the block.
    if n <= block_rows:
        rb = max(8, ((n + 7) // 8) * 8)
    else:
        rb = block_rows
    n_pad = ((n + rb - 1) // rb) * rb
    if n_pad != n:
        x2d = jnp.pad(x2d, ((0, n_pad - n), (0, 0)))
    grid = (n_pad // rb,)

    flops = 2 * n_pad * (e * HIDDEN_DIM + HIDDEN_DIM * HIDDEN_DIM
                         + HIDDEN_DIM * t_pad)
    bytes_accessed = (x2d.size * x2d.dtype.itemsize
                      + sum(int(p.size) * p.dtype.itemsize for p in params)
                      + n_pad * t_pad * 4)
    cost = pl.CostEstimate(flops=flops,
                           transcendentals=n_pad * t_pad,
                           bytes_accessed=bytes_accessed)

    out = pl.pallas_call(
        tpse_mlp_kernel,
        out_shape=jax.ShapeDtypeStruct((n_pad, t_pad), jnp.float32),
        grid=grid,
        in_specs=[
            pl.BlockSpec((rb, e), lambda i: (i, 0)),          # x: pipelined rows
            pl.BlockSpec(w1.shape, lambda i: (0, 0)),         # weights resident
            pl.BlockSpec(b1.shape, lambda i: (0, 0)),
            pl.BlockSpec(w2.shape, lambda i: (0, 0)),
            pl.BlockSpec(b2.shape, lambda i: (0, 0)),
            pl.BlockSpec(w3.shape, lambda i: (0, 0)),
            pl.BlockSpec(b3.shape, lambda i: (0, 0)),
        ],
        out_specs=pl.BlockSpec((rb, t_pad), lambda i: (i, 0)),
        compiler_params=pltpu.CompilerParams(
            dimension_semantics=("parallel",)),               # megacore on v7x
        cost_estimate=cost,
    )(x2d, w1, b1, w2, b2, w3, b3)

    # Slice/reshape fuse inside the jit; no separate eager pass over the
    # padded output.
    return out[:n, :TOKEN_DIM].reshape(b, s, TOKEN_DIM)


# ------------------------- deterministic parameter init ----------------------
def xavier_uniform(key, in_dim, out_dim):
    """Matches LinearNorm's xavier_uniform_ init (PyTorch weight is (out,in);
    we store the transpose (in,out) so the kernel computes x @ W)."""
    limit = math.sqrt(6.0 / (in_dim + out_dim))
    w = jax.random.uniform(key, (out_dim, in_dim), jnp.float32, -limit, limit)
    return w.T


def make_params(key):
    k1, k2, k3 = jax.random.split(key, 3)
    # bf16 weights (MXU operands), f32 biases (epilogue stays f32).
    w1 = xavier_uniform(k1, EMBED_DIM, HIDDEN_DIM).astype(jnp.bfloat16)
    b1 = jnp.zeros((1, HIDDEN_DIM), jnp.float32)
    w2 = xavier_uniform(k2, HIDDEN_DIM, HIDDEN_DIM).astype(jnp.bfloat16)
    b2 = jnp.zeros((1, HIDDEN_DIM), jnp.float32)
    # Last layer padded to 128 output lanes (zero columns) for lane-dense stores.
    w3_core = xavier_uniform(k3, HIDDEN_DIM, TOKEN_DIM).astype(jnp.bfloat16)
    w3 = jnp.zeros((HIDDEN_DIM, TOKEN_DIM_PADDED), jnp.bfloat16)
    w3 = w3.at[:, :TOKEN_DIM].set(w3_core)
    b3 = jnp.zeros((1, TOKEN_DIM_PADDED), jnp.float32)
    return (w1, b1, w2, b2, w3, b3)


# ---------------------------- pure-JAX reference ------------------------------
def ref_forward(inputs, params):
    w1, b1, w2, b2, w3, b3 = params
    b, s, e = inputs.shape
    x = inputs.reshape(-1, e)
    h = jnp.dot(x.astype(jnp.bfloat16), w1, preferred_element_type=jnp.float32)
    h = jnp.maximum(h + b1, 0.0)
    h = jnp.dot(h.astype(jnp.bfloat16), w2, preferred_element_type=jnp.float32)
    h = jnp.maximum(h + b2, 0.0)
    h = jnp.dot(h.astype(jnp.bfloat16), w3, preferred_element_type=jnp.float32)
    out = jnp.tanh(h + b3)
    return out[:, :TOKEN_DIM].reshape(b, s, TOKEN_DIM)


# ---------------------------------- main -------------------------------------
if __name__ == "__main__":
    key = jax.random.PRNGKey(0)
    k_in, k_par, k_big = jax.random.split(key, 3)

    params = make_params(k_par)

    # Small shape consistent with the module (B=2, S=8, E=32).
    inputs = jax.random.normal(k_in, (BATCH, SEQ, EMBED_DIM), jnp.float32)
    out = jax.block_until_ready(tpse_linear_forward(inputs, params))
    ref = ref_forward(inputs, params)
    assert out.shape == (BATCH, SEQ, TOKEN_DIM)
    assert jnp.allclose(out, ref, atol=1e-3, rtol=1e-3), float(
        jnp.max(jnp.abs(out - ref)))

    # Larger run to exercise the multi-block grid + ragged-tail padding path.
    big_inputs = jax.random.normal(k_big, (4, 300, EMBED_DIM), jnp.float32)
    big_out = jax.block_until_ready(tpse_linear_forward(big_inputs, params))
    big_ref = ref_forward(big_inputs, params)
    assert big_out.shape == (4, 300, TOKEN_DIM)
    assert jnp.allclose(big_out, big_ref, atol=1e-3, rtol=1e-3), float(
        jnp.max(jnp.abs(big_out - big_ref)))

    print("KERNEL_OK")
</pallas_src>

<mosaic_0001>
module attributes {stable_mosaic.version = 11 : i64} {
  func.func @tpse_mlp_kernel(%arg0: i32, %arg1: memref<16x32xf32, #tpu.memory_space<vmem>>, %arg2: memref<32x32xbf16, #tpu.memory_space<vmem>>, %arg3: memref<1x32xf32, #tpu.memory_space<vmem>>, %arg4: memref<32x32xbf16, #tpu.memory_space<vmem>>, %arg5: memref<1x32xf32, #tpu.memory_space<vmem>>, %arg6: memref<32x128xbf16, #tpu.memory_space<vmem>>, %arg7: memref<1x128xf32, #tpu.memory_space<vmem>>, %arg8: memref<16x128xf32, #tpu.memory_space<vmem>>) attributes {dimension_semantics = [#tpu.dimension_semantics<parallel>], iteration_bounds = array<i64: 1>, scalar_prefetch = 0 : i64, scratch_operands = 0 : i64, tpu.core_type = #tpu.core_type<tc>, window_params = [{transform_indices = @transform_0, window_bounds = array<i64: 16, 32>}, {pipeline_mode = #tpu.pipeline_mode<synchronous>, transform_indices = @transform_1, window_bounds = array<i64: 32, 32>}, {pipeline_mode = #tpu.pipeline_mode<synchronous>, transform_indices = @transform_2, window_bounds = array<i64: 1, 32>}, {pipeline_mode = #tpu.pipeline_mode<synchronous>, transform_indices = @transform_3, window_bounds = array<i64: 32, 32>}, {pipeline_mode = #tpu.pipeline_mode<synchronous>, transform_indices = @transform_4, window_bounds = array<i64: 1, 32>}, {pipeline_mode = #tpu.pipeline_mode<synchronous>, transform_indices = @transform_5, window_bounds = array<i64: 32, 128>}, {pipeline_mode = #tpu.pipeline_mode<synchronous>, transform_indices = @transform_6, window_bounds = array<i64: 1, 128>}, {transform_indices = @transform_7, window_bounds = array<i64: 16, 128>}]} {
    %c0 = arith.constant 0 : index
    %c0_0 = arith.constant 0 : index
    %0 = vector.load %arg1[%c0, %c0_0] : memref<16x32xf32, #tpu.memory_space<vmem>>, vector<16x32xf32>
    %1 = arith.truncf %0 : vector<16x32xf32> to vector<16x32xbf16>
    %c0_1 = arith.constant 0 : index
    %c0_2 = arith.constant 0 : index
    %2 = vector.load %arg2[%c0_1, %c0_2] : memref<32x32xbf16, #tpu.memory_space<vmem>>, vector<32x32xbf16>
    %cst = arith.constant dense<0.000000e+00> : vector<16x32xf32>
    %3 = tpu.matmul %1, %2, %cst {dimension_numbers = #tpu.dot_dimension_numbers<[1], [0], [0], [1], [0, 0, 1, 1], [], []>} : vector<16x32xbf16>, vector<32x32xbf16>, vector<16x32xf32> -> vector<16x32xf32>
    %c0_3 = arith.constant 0 : index
    %c0_4 = arith.constant 0 : index
    %4 = vector.load %arg3[%c0_3, %c0_4] : memref<1x32xf32, #tpu.memory_space<vmem>>, vector<1x32xf32>
    %5 = vector.broadcast %4 : vector<1x32xf32> to vector<16x32xf32>
    %6 = arith.addf %3, %5 : vector<16x32xf32>
    %cst_5 = arith.constant 0.000000e+00 : f32
    %7 = vector.broadcast %cst_5 : f32 to vector<16x32xf32>
    %8 = arith.maximumf %6, %7 : vector<16x32xf32>
    %9 = arith.truncf %8 : vector<16x32xf32> to vector<16x32xbf16>
    %c0_6 = arith.constant 0 : index
    %c0_7 = arith.constant 0 : index
    %10 = vector.load %arg4[%c0_6, %c0_7] : memref<32x32xbf16, #tpu.memory_space<vmem>>, vector<32x32xbf16>
    %cst_8 = arith.constant dense<0.000000e+00> : vector<16x32xf32>
    %11 = tpu.matmul %9, %10, %cst_8 {dimension_numbers = #tpu.dot_dimension_numbers<[1], [0], [0], [1], [0, 0, 1, 1], [], []>} : vector<16x32xbf16>, vector<32x32xbf16>, vector<16x32xf32> -> vector<16x32xf32>
    %c0_9 = arith.constant 0 : index
    %c0_10 = arith.constant 0 : index
    %12 = vector.load %arg5[%c0_9, %c0_10] : memref<1x32xf32, #tpu.memory_space<vmem>>, vector<1x32xf32>
    %13 = vector.broadcast %12 : vector<1x32xf32> to vector<16x32xf32>
    %14 = arith.addf %11, %13 : vector<16x32xf32>
    %cst_11 = arith.constant 0.000000e+00 : f32
    %15 = vector.broadcast %cst_11 : f32 to vector<16x32xf32>
    %16 = arith.maximumf %14, %15 : vector<16x32xf32>
    %17 = arith.truncf %16 : vector<16x32xf32> to vector<16x32xbf16>
    %c0_12 = arith.constant 0 : index
    %c0_13 = arith.constant 0 : index
    %18 = vector.load %arg6[%c0_12, %c0_13] : memref<32x128xbf16, #tpu.memory_space<vmem>>, vector<32x128xbf16>
    %cst_14 = arith.constant dense<0.000000e+00> : vector<16x128xf32>
    %19 = tpu.matmul %17, %18, %cst_14 {dimension_numbers = #tpu.dot_dimension_numbers<[1], [0], [0], [1], [0, 0, 1, 1], [], []>} : vector<16x32xbf16>, vector<32x128xbf16>, vector<16x128xf32> -> vector<16x128xf32>
    %c0_15 = arith.constant 0 : index
    %c0_16 = arith.constant 0 : index
    %20 = vector.load %arg7[%c0_15, %c0_16] : memref<1x128xf32, #tpu.memory_space<vmem>>, vector<1x128xf32>
    %21 = vector.broadcast %20 : vector<1x128xf32> to vector<16x128xf32>
    %22 = arith.addf %19, %21 : vector<16x128xf32>
    %23 = math.tanh %22 : vector<16x128xf32>
    %c0_17 = arith.constant 0 : index
    %c0_18 = arith.constant 0 : index
    %24 = vector.load %arg8[%c0_17, %c0_18] : memref<16x128xf32, #tpu.memory_space<vmem>>, vector<16x128xf32>
    tpu.vector_store %arg8[%c0_17, %c0_18], %23 {strides = array<i32>} : memref<16x128xf32, #tpu.memory_space<vmem>>, vector<16x128xf32>,
    return
  }
  func.func @transform_0(%arg0: i32) -> (i32, i32) {
    %c0_i32 = arith.constant 0 : i32
    %c0_i32_0 = arith.constant 0 : i32
    return %arg0, %c0_i32 : i32, i32
  }
  func.func @transform_1(%arg0: i32) -> (i32, i32) {
    %c0_i32 = arith.constant 0 : i32
    %c0_i32_0 = arith.constant 0 : i32
    %c0_i32_1 = arith.constant 0 : i32
    return %c0_i32, %c0_i32_0 : i32, i32
  }
  func.func @transform_2(%arg0: i32) -> (i32, i32) {
    %c0_i32 = arith.constant 0 : i32
    %c0_i32_0 = arith.constant 0 : i32
    %c0_i32_1 = arith.constant 0 : i32
    return %c0_i32, %c0_i32_0 : i32, i32
  }
  func.func @transform_3(%arg0: i32) -> (i32, i32) {
    %c0_i32 = arith.constant 0 : i32
    %c0_i32_0 = arith.constant 0 : i32
    %c0_i32_1 = arith.constant 0 : i32
    return %c0_i32, %c0_i32_0 : i32, i32
  }
  func.func @transform_4(%arg0: i32) -> (i32, i32) {
    %c0_i32 = arith.constant 0 : i32
    %c0_i32_0 = arith.constant 0 : i32
    %c0_i32_1 = arith.constant 0 : i32
    return %c0_i32, %c0_i32_0 : i32, i32
  }
  func.func @transform_5(%arg0: i32) -> (i32, i32) {
    %c0_i32 = arith.constant 0 : i32
    %c0_i32_0 = arith.constant 0 : i32
    %c0_i32_1 = arith.constant 0 : i32
    return %c0_i32, %c0_i32_0 : i32, i32
  }
  func.func @transform_6(%arg0: i32) -> (i32, i32) {
    %c0_i32 = arith.constant 0 : i32
    %c0_i32_0 = arith.constant 0 : i32
    %c0_i32_1 = arith.constant 0 : i32
    return %c0_i32, %c0_i32_0 : i32, i32
  }
  func.func @transform_7(%arg0: i32) -> (i32, i32) {
    %c0_i32 = arith.constant 0 : i32
    %c0_i32_0 = arith.constant 0 : i32
    return %arg0, %c0_i32 : i32, i32
  }
}

</mosaic_0001>

<llo_original>
// kernel: tpse_linear_forward.1
$region0: #{tpse_linear_forward.1}
  #allocation0 [shape = 'u32[]', space=smem, size = 0x4, offset = 0x4, fixed_abs, tag = 'smem constant byte address 0x4 - core index']
  #allocation1 [shape = 'u32[144,128]{1,0:T(1,128)}', space=vmem, size = 0x12000, scoped, tag = 'internal scratch']
  %s0 = inlined_call_operand.hbm [shape: f32[16,32], index: 0, kind: input, shape index: {}]
  %s1 = inlined_call_operand.hbm [shape: bf16[32,32], index: 1, kind: input, shape index: {}]
  %s2 = inlined_call_operand.vmem [shape: f32[1,32], index: 2, kind: input, shape index: {}]
  %s3 = inlined_call_operand.hbm [shape: bf16[32,32], index: 3, kind: input, shape index: {}]
  %s4 = inlined_call_operand.vmem [shape: f32[1,32], index: 4, kind: input, shape index: {}]
  %s5 = inlined_call_operand.vmem [shape: bf16[32,128], index: 5, kind: input, shape index: {}]
  %s6 = inlined_call_operand.vmem [shape: f32[1,128], index: 6, kind: input, shape index: {}]
  %s7 = inlined_call_operand.vmem [shape: f32[16,128], index: 7, kind: output, shape index: {}]
  %s8 = sld [smem:[#allocation0]]
  $region50: #{tpse_linear_forward.1} parent=0
    _
  %s10 = ssub.s32 1, %s8
  %s11 = scalar_select 0, %s10, %s8
  $region1: #{tpse_linear_forward.1} parent=0
    #allocation2 [shape = 'u8[8192]{0}', space=vmem, size = 0x2000, scoped, tag = 'input window, operand 0, single buffered']
    #allocation3 [shape = 's32[1]{0}', space=sflag, size = 0x4, scoped, tag = 'scoped memory for tpse_linear_forward.1']
    #allocation4 [shape = 'u8[8192]{0}', space=vmem, size = 0x2000, scoped, tag = 'input window, operand 1, single buffered']
    #allocation5 [shape = 's32[1]{0}', space=sflag, size = 0x4, scoped, tag = 'scoped memory for tpse_linear_forward.1']
    #allocation6 [shape = 'u8[8192]{0}', space=vmem, size = 0x2000, scoped, tag = 'input window, operand 3, single buffered']
    %12 = vsyncpa [#allocation3], 0
    %13 = vsyncpa [#allocation5], 0
    // Predicated region
    $region2: #{tpse_linear_forward.1} parent=1 // pred_check
      _
    $region3: #{tpse_linear_forward.1} parent=1 // pred_check_branch
      %15 = sbr.rel (0) target = $region5
    $region4: #{tpse_linear_forward.1} parent=1 // pred_region
      %s17 = ssub.s32 256, 256
      %18 = vsyncadd [#allocation3], %s17
      %s19 = sshll.u32 [#allocation2], 4
      %s20 = int_to_ptr.vmem [resolvable:$true] %s19
      %25 = dma.hbm_to_vmem [thread:$0]  %s0, 256, %s20, [#allocation3], 128, 128, 8
    $region5: #{tpse_linear_forward.1} parent=1 // pred_fallthru
      _
    // Predicated region
    $region6: #{tpse_linear_forward.1} parent=1 // pred_check
      _
    $region7: #{tpse_linear_forward.1} parent=1 // pred_check_branch
      %27 = sbr.rel (0) target = $region9
    $region8: #{tpse_linear_forward.1} parent=1 // pred_region
      %s29 = ssub.s32 256, 256
      %30 = vsyncadd [#allocation5], %s29
      %s31 = sshll.u32 [#allocation4], 4
      %s32 = int_to_ptr.vmem [resolvable:$true] %s31
      %37 = dma.hbm_to_vmem [thread:$0]  %s1, 256, %s32, [#allocation5], 64, 64, 4
    $region9: #{tpse_linear_forward.1} parent=1 // pred_fallthru
      _
    // Predicated region
    $region10: #{tpse_linear_forward.1} parent=1 // pred_check
      _
    $region11: #{tpse_linear_forward.1} parent=1 // pred_check_branch
      %39 = sbr.rel (0) target = $region13
    $region12: #{tpse_linear_forward.1} parent=1 // pred_region
      _
    $region13: #{tpse_linear_forward.1} parent=1 // pred_fallthru
      _
    // Predicated region
    $region14: #{tpse_linear_forward.1} parent=1 // pred_check
      _
    $region15: #{tpse_linear_forward.1} parent=1 // pred_check_branch
      %41 = sbr.rel (0) target = $region17
    $region16: #{tpse_linear_forward.1} parent=1 // pred_region
      %s43 = ssub.s32 256, 256
      %44 = vsyncadd [#allocation5], %s43
      %s45 = sshll.u32 [#allocation6], 4
      %s46 = int_to_ptr.vmem [resolvable:$true] %s45
      %51 = dma.hbm_to_vmem [thread:$0]  %s3, 256, %s46, [#allocation5], 64, 64, 4
    $region17: #{tpse_linear_forward.1} parent=1 // pred_fallthru
      _
    // Predicated region
    $region18: #{tpse_linear_forward.1} parent=1 // pred_check
      _
    $region19: #{tpse_linear_forward.1} parent=1 // pred_check_branch
      %53 = sbr.rel (0) target = $region21
    $region20: #{tpse_linear_forward.1} parent=1 // pred_region
      _
    $region21: #{tpse_linear_forward.1} parent=1 // pred_fallthru
      _
    // Predicated region
    $region22: #{tpse_linear_forward.1} parent=1 // pred_check
      _
    $region23: #{tpse_linear_forward.1} parent=1 // pred_check_branch
      %55 = sbr.rel (0) target = $region25
    $region24: #{tpse_linear_forward.1} parent=1 // pred_region
      _
    $region25: #{tpse_linear_forward.1} parent=1 // pred_fallthru
      _
    // Predicated region
    $region26: #{tpse_linear_forward.1} parent=1 // pred_check
      _
    $region27: #{tpse_linear_forward.1} parent=1 // pred_check_branch
      %57 = sbr.rel (0) target = $region29
    $region28: #{tpse_linear_forward.1} parent=1 // pred_region
      _
    $region29: #{tpse_linear_forward.1} parent=1 // pred_fallthru
      _
    // Predicated region
    $region30: #{tpse_linear_forward.1} parent=1 // pred_check
      _
    $region31: #{tpse_linear_forward.1} parent=1 // pred_check_branch
      %59 = sbr.rel (0) target = $region33
    $region32: #{tpse_linear_forward.1} parent=1 // pred_region
      %60 = dma.done [#allocation3], 256
    $region33: #{tpse_linear_forward.1} parent=1 // pred_fallthru
      _
    // Predicated region
    $region34: #{tpse_linear_forward.1} parent=1 // pred_check
      _
    $region35: #{tpse_linear_forward.1} parent=1 // pred_check_branch
      %62 = sbr.rel (0) target = $region37
    $region36: #{tpse_linear_forward.1} parent=1 // pred_region
      %63 = dma.done [#allocation5], 256
    $region37: #{tpse_linear_forward.1} parent=1 // pred_fallthru
      _
    // Predicated region
    $region38: #{tpse_linear_forward.1} parent=1 // pred_check
      _
    $region39: #{tpse_linear_forward.1} parent=1 // pred_check_branch
      %65 = sbr.rel (0) target = $region41
    $region40: #{tpse_linear_forward.1} parent=1 // pred_region
      %66 = dma.done [#allocation5], 256
    $region41: #{tpse_linear_forward.1} parent=1 // pred_fallthru
      _
    %v68 = vld [vmem:[#allocation2] sm:$0xff]
    %v69 = vld [vmem:[#allocation2 + $0x8] sm:$0xff]
    %v70 = vpack.c.bf16 %v69, %v68
    %v71 = vld [vmem:[#allocation4] sm:$0xf]
    %v72 = vld [vmem:[#allocation4 + $0x4] sm:$0xf]
    %v73 = vld [vmem:[#allocation4 + $0x8] sm:$0xf]
    %v74 = vld [vmem:[#allocation4 + $0xc] sm:$0xf]
    %v75 = vld [vmem:[%s2] sm:$0x1]
    %v77 = vlaneseq
    %v78 = vshrl.u32 %v77, 7
    %v79 = vsub.s32 0, %v78
    %v80 = vrot.slane %v75, %v79
    %v86 = vunpack.c.l.b16 %v71
    %v87 = vunpack.c.l.b16 %v72
    %v88 = vunpack.c.l.b16 %v73
    %v89 = vunpack.c.l.b16 %v74
    %v90 = vpack.c.b16 %v87, %v86
    %v91 = vpack.c.b16 %v89, %v88
    %vm94 = vcmask 261120
    %v96 = vsel %vm94, %v70, 0
    %98 = vmatprep.subr.bf16.mxu0 0
    %99 = vmatpush1.bf16.msra.mxu0 %v90
    %100 = vmatprep.subr.bf16.mxu0 0
    %101 = vmatpush1.bf16.msra.mxu0 %v91
    %102 = vmatprep.subr.bf16.mxu0 0
    %103 = vmatpush1.bf16.msra.mxu0 0
    %104 = vmatprep.subr.bf16.mxu0 0
    %105 = vmatpush1.bf16.msra.mxu0 0
    %106 = vmatprep.subr.bf16.mxu0 0
    %107 = vmatpush1.bf16.msra.mxu0 0
    %108 = vmatprep.subr.bf16.mxu0 0
    %109 = vmatpush1.bf16.msra.mxu0 0
    %110 = vmatprep.subr.bf16.mxu0 0
    %111 = vmatpush1.bf16.msra.mxu0 0
    %112 = vmatprep.subr.bf16.mxu0 0
    %113 = vmatpush1.bf16.msra.mxu0 0
    %114 = vmatprep.subr.bf16.mxu0 0
    %115 = vmatpush1.bf16.msra.mxu0 0
    %116 = vmatprep.subr.bf16.mxu0 0
    %117 = vmatpush1.bf16.msra.mxu0 0
    %118 = vmatprep.subr.bf16.mxu0 0
    %119 = vmatpush1.bf16.msra.mxu0 0
    %120 = vmatprep.subr.bf16.mxu0 0
    %121 = vmatpush1.bf16.msra.mxu0 0
    %122 = vmatprep.subr.bf16.mxu0 0
    %123 = vmatpush1.bf16.msra.mxu0 0
    %124 = vmatprep.subr.bf16.mxu0 0
    %125 = vmatpush1.bf16.msra.mxu0 0
    %126 = vmatprep.subr.bf16.mxu0 0
    %127 = vmatpush1.bf16.msra.mxu0 0
    %128 = vmatprep.subr.bf16.mxu0 0
    %129 = vmatpush1.bf16.msra.mxu0 0
    %130 = vmatprep.mubr.bf16.mxu0 0
    %131 = vmatmul.mubr.bf16.gmra.mrb[0].mxu0 %v96
    %v132 = vpop.f32.mrb[0].mxu0
    %v133 = vadd.f32 %v80, %v132
    %v134 = vpop.f32.mrb[0].mxu0
    %v135 = vpop.f32.mrb[0].mxu0
    %v136 = vadd.f32 %v80, %v135
    %v137 = vpop.f32.mrb[0].mxu0
    %138 = vdwg.mxu0
    %v139 = vmax.f32 %v133, 0.0
    %v140 = vmax.f32 %v136, 0.0
    %v141 = vpack.c.bf16 %v140, %v139
    %v142 = vld [vmem:[#allocation6] sm:$0xf]
    %v143 = vld [vmem:[#allocation6 + $0x4] sm:$0xf]
    %v144 = vld [vmem:[#allocation6 + $0x8] sm:$0xf]
    %v145 = vld [vmem:[#allocation6 + $0xc] sm:$0xf]
    %v146 = vld [vmem:[%s4] sm:$0x1]
    %v148 = vlaneseq
    %v149 = vshrl.u32 %v148, 7
    %v150 = vsub.s32 0, %v149
    %v151 = vrot.slane %v146, %v150
    %v157 = vunpack.c.l.b16 %v142
    %v158 = vunpack.c.l.b16 %v143
    %v159 = vunpack.c.l.b16 %v144
    %v160 = vunpack.c.l.b16 %v145
    %v161 = vpack.c.b16 %v158, %v157
    %v162 = vpack.c.b16 %v160, %v159
    %v166 = vsel %vm94, %v141, 0
    %168 = vmatprep.subr.bf16.mxu0 0
    %169 = vmatpush1.bf16.msra.mxu0 %v161
    %170 = vmatprep.subr.bf16.mxu0 0
    %171 = vmatpush1.bf16.msra.mxu0 %v162
    %172 = vmatprep.subr.bf16.mxu0 0
    %173 = vmatpush1.bf16.msra.mxu0 0
    %174 = vmatprep.subr.bf16.mxu0 0
    %175 = vmatpush1.bf16.msra.mxu0 0
    %176 = vmatprep.subr.bf16.mxu0 0
    %177 = vmatpush1.bf16.msra.mxu0 0
    %178 = vmatprep.subr.bf16.mxu0 0
    %179 = vmatpush1.bf16.msra.mxu0 0
    %180 = vmatprep.subr.bf16.mxu0 0
    %181 = vmatpush1.bf16.msra.mxu0 0
    %182 = vmatprep.subr.bf16.mxu0 0
    %183 = vmatpush1.bf16.msra.mxu0 0
    %184 = vmatprep.subr.bf16.mxu0 0
    %185 = vmatpush1.bf16.msra.mxu0 0
    %186 = vmatprep.subr.bf16.mxu0 0
    %187 = vmatpush1.bf16.msra.mxu0 0
    %188 = vmatprep.subr.bf16.mxu0 0
    %189 = vmatpush1.bf16.msra.mxu0 0
    %190 = vmatprep.subr.bf16.mxu0 0
    %191 = vmatpush1.bf16.msra.mxu0 0
    %192 = vmatprep.subr.bf16.mxu0 0
    %193 = vmatpush1.bf16.msra.mxu0 0
    %194 = vmatprep.subr.bf16.mxu0 0
    %195 = vmatpush1.bf16.msra.mxu0 0
    %196 = vmatprep.subr.bf16.mxu0 0
    %197 = vmatpush1.bf16.msra.mxu0 0
    %198 = vmatprep.subr.bf16.mxu0 0
    %199 = vmatpush1.bf16.msra.mxu0 0
    %200 = vmatprep.mubr.bf16.mxu0 0
    %201 = vmatmul.mubr.bf16.gmra.mrb[0].mxu0 %v166
    %v202 = vpop.f32.mrb[0].mxu0
    %v203 = vadd.f32 %v151, %v202
    %v204 = vpop.f32.mrb[0].mxu0
    %v205 = vpop.f32.mrb[0].mxu0
    %v206 = vadd.f32 %v151, %v205
    %v207 = vpop.f32.mrb[0].mxu0
    %208 = vdwg.mxu0
    %v209 = vmax.f32 %v203, 0.0
    %v210 = vmax.f32 %v206, 0.0
    %v211 = vpack.c.bf16 %v210, %v209
    %v212 = vld [vmem:[%s5] sm:$0xf]
    %v213 = vld [vmem:[%s5 + $0x4] sm:$0xf]
    %v214 = vld [vmem:[%s5 + $0x8] sm:$0xf]
    %v215 = vld [vmem:[%s5 + $0xc] sm:$0xf]
    %v216 = vld [vmem:[%s6] sm:$0x1]
    %v218 = vlaneseq
    %v219 = vshrl.u32 %v218, 7
    %v220 = vsub.s32 0, %v219
    %v221 = vrot.slane %v216, %v220
    %v227 = vunpack.c.l.b16 %v212
    %v228 = vunpack.c.l.b16 %v213
    %v229 = vunpack.c.l.b16 %v214
    %v230 = vunpack.c.l.b16 %v215
    %v231 = vpack.c.b16 %v228, %v227
    %v232 = vpack.c.b16 %v230, %v229
    %v236 = vsel %vm94, %v211, 0
    %238 = vmatprep.subr.bf16.mxu0 0
    %239 = vmatpush1.bf16.msra.mxu0 %v231
    %240 = vmatprep.subr.bf16.mxu0 0
    %241 = vmatpush1.bf16.msra.mxu0 %v232
    %242 = vmatprep.subr.bf16.mxu0 0
    %243 = vmatpush1.bf16.msra.mxu0 0
    %244 = vmatprep.subr.bf16.mxu0 0
    %245 = vmatpush1.bf16.msra.mxu0 0
    %246 = vmatprep.subr.bf16.mxu0 0
    %247 = vmatpush1.bf16.msra.mxu0 0
    %248 = vmatprep.subr.bf16.mxu0 0
    %249 = vmatpush1.bf16.msra.mxu0 0
    %250 = vmatprep.subr.bf16.mxu0 0
    %251 = vmatpush1.bf16.msra.mxu0 0
    %252 = vmatprep.subr.bf16.mxu0 0
    %253 = vmatpush1.bf16.msra.mxu0 0
    %254 = vmatprep.subr.bf16.mxu0 0
    %255 = vmatpush1.bf16.msra.mxu0 0
    %256 = vmatprep.subr.bf16.mxu0 0
    %257 = vmatpush1.bf16.msra.mxu0 0
    %258 = vmatprep.subr.bf16.mxu0 0
    %259 = vmatpush1.bf16.msra.mxu0 0
    %260 = vmatprep.subr.bf16.mxu0 0
    %261 = vmatpush1.bf16.msra.mxu0 0
    %262 = vmatprep.subr.bf16.mxu0 0
    %263 = vmatpush1.bf16.msra.mxu0 0
    %264 = vmatprep.subr.bf16.mxu0 0
    %265 = vmatpush1.bf16.msra.mxu0 0
    %266 = vmatprep.subr.bf16.mxu0 0
    %267 = vmatpush1.bf16.msra.mxu0 0
    %268 = vmatprep.subr.bf16.mxu0 0
    %269 = vmatpush1.bf16.msra.mxu0 0
    %270 = vmatprep.mubr.bf16.mxu0 0
    %271 = vmatmul.mubr.bf16.gmra.mrb[0].mxu0 %v236
    %v272 = vpop.f32.mrb[0].mxu0
    %v273 = vadd.f32 %v221, %v272
    %v274 = vpop.f32.mrb[0].mxu0
    %v275 = vpop.f32.mrb[0].mxu0
    %v276 = vadd.f32 %v221, %v275
    %v277 = vpop.f32.mrb[0].mxu0
    %278 = vdwg.mxu0
    %v279 = vtanh.pop %v273
    %v280 = vtanh.pop %v276
    %281 = vst [vmem:[%s7] sm:$0xff] %v279
    %282 = vst [vmem:[%s7 + $0x8] sm:$0xff] %v280
    // Predicated region
    $region42: #{tpse_linear_forward.1} parent=1 // pred_check
      _
    $region43: #{tpse_linear_forward.1} parent=1 // pred_check_branch
      %284 = sbr.rel (0) target = $region45
    $region44: #{tpse_linear_forward.1} parent=1 // pred_region
      _
    $region45: #{tpse_linear_forward.1} parent=1 // pred_fallthru
      _
    // Predicated region
    $region46: #{tpse_linear_forward.1} parent=1 // pred_check
      _
    $region47: #{tpse_linear_forward.1} parent=1 // pred_check_branch
      %286 = sbr.rel (0) target = $region49
    $region48: #{tpse_linear_forward.1} parent=1 // pred_region
      _
    $region49: #{tpse_linear_forward.1} parent=1 // pred_fallthru
      _
    %287 = vsyncpa [#allocation3], 1
    %288 = vsyncpa [#allocation5], 1

</llo_original>
